<compile_context>
chip_gen: v7x
topology: tpu7x:2x2x1
jax: 0.10.0
libtpu: 0.0.40
codegen_flags: <defaults>
</compile_context>

<pallas_src>
import functools

import jax
import jax.numpy as jnp
from jax import lax
from jax.experimental import pallas as pl
from jax.experimental.pallas import tpu as pltpu


def mha_kernel(x_ref, wqkv_ref, bqkv_ref, wp_ref, bp_ref, out_ref, cat_ref, *,
               heads, d_head, inv_norm, compute_dtype):
    dim = heads * d_head

    x = x_ref[0]                                                     # (T, dim) bf16

    # Fused QKV projection: one MXU matmul, N = 3*dim (lane-dense), f32 epilogue.
    qkv = jnp.dot(x, wqkv_ref[...],
                  preferred_element_type=jnp.float32) + bqkv_ref[...]  # (T, 3*dim) f32

    # Static unrolled head loop (weights already resident in VMEM).
    for h in range(heads):
        q = qkv[:, h * d_head:(h + 1) * d_head] * inv_norm             # pre-scaled q (T, d)
        k = qkv[:, dim + h * d_head: dim + (h + 1) * d_head]           # (T, d)
        v = qkv[:, 2 * dim + h * d_head: 2 * dim + (h + 1) * d_head]   # (T, d)

        # Scores: q @ k^T (contract last dims; avoids an explicit transpose).
        s = lax.dot_general(q.astype(compute_dtype), k.astype(compute_dtype),
                            (((1,), (1,)), ((), ())),
                            preferred_element_type=jnp.float32)        # (Tq, Tk) f32

        # PyTorch reference: softmax over dim=1 of (B, Tq, Tk) == QUERY axis
        # == axis 0 of this per-batch (Tq, Tk) slice.
        m = jnp.max(s, axis=0, keepdims=True)                          # (1, Tk)
        e = jnp.exp(s - m)
        denom = jnp.sum(e, axis=0, keepdims=True)                      # (1, Tk)
        p = e * pl.reciprocal(denom, approx=True)                      # EUP recip + mul

        attn = jnp.dot(p.astype(compute_dtype), v.astype(compute_dtype),
                       preferred_element_type=jnp.float32)             # (T, d) f32

        # Concatenate head outputs in VMEM (static lane-offset store).
        cat_ref[:, h * d_head:(h + 1) * d_head] = attn

    # Output projection over all heads at once: (T, dim) @ (dim, dim).
    out_ref[0] = (jnp.dot(cat_ref[...].astype(compute_dtype), wp_ref[...],
                          preferred_element_type=jnp.float32)
                  + bp_ref[...]).astype(out_ref.dtype)


def multi_head_attention_pallas(x, wq, wk, wv, bq, bk, bv, wp, bp,
                                *, compute_dtype=jnp.bfloat16):
    """x: (B, T, dim); wq/wk/wv: (H, dim, d); bq/bk/bv: (H, 1, d);
    wp: (H, d, dim) (projector weight split along its input rows); bp: (1, dim)."""
    B, T, dim = x.shape
    H, _, d = wq.shape
    inv_norm = 1.0 / (float(d) ** 0.5)   # Attention.norm = (dim // heads) ** 0.5

    # --- one-time layout plumbing (plain XLA, outside the kernel) ------------
    def _wflat(w):   # (H, dim, d) -> (dim, H*d), head-major columns
        return jnp.transpose(w, (1, 0, 2)).reshape(dim, H * d)

    def _bflat(b):   # (H, 1, d) -> (H*d,)
        return b.reshape(H * d)

    wqkv = jnp.concatenate([_wflat(wq), _wflat(wk), _wflat(wv)],
                           axis=1).astype(compute_dtype)               # (dim, 3*dim)
    bqkv = jnp.concatenate([_bflat(bq), _bflat(bk), _bflat(bv)]
                           )[None, :].astype(jnp.float32)              # (1, 3*dim)
    wp_full = wp.reshape(dim, dim).astype(compute_dtype)               # (dim, dim)
    bp2 = bp.reshape(1, dim).astype(jnp.float32)                       # (1, dim)
    x_c = x.astype(compute_dtype)

    kernel = functools.partial(mha_kernel, heads=H, d_head=d,
                               inv_norm=inv_norm, compute_dtype=compute_dtype)

    return pl.pallas_call(
        kernel,
        out_shape=jax.ShapeDtypeStruct((B, T, dim), jnp.float32),
        grid_spec=pltpu.PrefetchScalarGridSpec(
            num_scalar_prefetch=0,
            grid=(B,),
            in_specs=[
                pl.BlockSpec((1, T, dim), lambda b: (b, 0, 0)),        # x (streamed per batch)
                pl.BlockSpec((dim, 3 * dim), lambda b: (0, 0)),        # fused Wqkv (resident)
                pl.BlockSpec((1, 3 * dim), lambda b: (0, 0)),          # fused bqkv (resident)
                pl.BlockSpec((dim, dim), lambda b: (0, 0)),            # Wp (resident)
                pl.BlockSpec((1, dim), lambda b: (0, 0)),              # bp (resident)
            ],
            out_specs=pl.BlockSpec((1, T, dim), lambda b: (b, 0, 0)),
            scratch_shapes=[pltpu.VMEM((T, dim), jnp.float32)],        # concat(head attn)
        ),
        compiler_params=pltpu.CompilerParams(
            dimension_semantics=("parallel",)),
    )(x_c, wqkv, bqkv, wp_full, bp2)


def mha_reference(x, wq, wk, wv, bq, bk, bv, wp, bp):
    """Pure-JAX f32 mirror of the PyTorch module (softmax over dim=1, concat, project)."""
    H, _, d = wq.shape
    dim = x.shape[-1]
    norm = float(d) ** 0.5
    outs = []
    for h in range(H):
        q = x @ wq[h] + bq[h]                                  # (B, T, d)
        k = x @ wk[h] + bk[h]
        v = x @ wv[h] + bv[h]
        s = jnp.einsum('bqd,bkd->bqk', q, k) / norm            # (B, Tq, Tk)
        p = jax.nn.softmax(s, axis=1)                          # dim=1 as in torch code
        outs.append(jnp.einsum('bqk,bkd->bqd', p, v))          # (B, T, d)
    cat = jnp.concatenate(outs, axis=-1)                       # (B, T, dim)
    wp_full = wp.reshape(dim, dim)
    return cat @ wp_full + bp                                  # (B, T, dim)


if __name__ == "__main__":
    # Small demo shapes consistent with the module (dim divisible by heads).
    # Tune / benchmark at real BERT shapes (T=512, dim=768, heads=8 -> d=96).
    B, T, heads, dim = 2, 8, 4, 32
    d = dim // heads

    key = jax.random.PRNGKey(0)
    ks = jax.random.split(key, 9)

    x  = jax.random.normal(ks[0], (B, T, dim), jnp.float32)
    wq = jax.random.normal(ks[1], (heads, dim, d), jnp.float32) * 0.1
    wk = jax.random.normal(ks[2], (heads, dim, d), jnp.float32) * 0.1
    wv = jax.random.normal(ks[3], (heads, dim, d), jnp.float32) * 0.1
    bq = jax.random.normal(ks[4], (heads, 1, d), jnp.float32) * 0.01
    bk = jax.random.normal(ks[5], (heads, 1, d), jnp.float32) * 0.01
    bv = jax.random.normal(ks[6], (heads, 1, d), jnp.float32) * 0.01
    wp = jax.random.normal(ks[7], (heads, d, dim), jnp.float32) * 0.1
    bp = jax.random.normal(ks[8], (1, dim), jnp.float32) * 0.01

    out = jax.block_until_ready(
        multi_head_attention_pallas(x, wq, wk, wv, bq, bk, bv, wp, bp))

    ref = mha_reference(x, wq, wk, wv, bq, bk, bv, wp, bp)
    assert out.shape == (B, T, dim), out.shape
    # Tolerances account for bf16 MXU operands + approx reciprocal vs f32 reference.
    assert jnp.allclose(out, ref, rtol=2e-2, atol=2e-2), (
        float(jnp.max(jnp.abs(out - ref))))

    print("KERNEL_OK")
</pallas_src>

<mosaic_0001>
module attributes {stable_mosaic.version = 11 : i64} {
  func.func @mha_kernel(%arg0: i32, %arg1: memref<1x8x32xbf16, #tpu.memory_space<vmem>>, %arg2: memref<32x96xbf16, #tpu.memory_space<vmem>>, %arg3: memref<1x96xf32, #tpu.memory_space<vmem>>, %arg4: memref<32x32xbf16, #tpu.memory_space<vmem>>, %arg5: memref<1x32xf32, #tpu.memory_space<vmem>>, %arg6: memref<1x8x32xf32, #tpu.memory_space<vmem>>, %arg7: memref<8x32xf32, #tpu.memory_space<vmem>>) attributes {dimension_semantics = [#tpu.dimension_semantics<parallel>], iteration_bounds = array<i64: 2>, scalar_prefetch = 0 : i64, scratch_operands = 1 : i64, tpu.core_type = #tpu.core_type<tc>, window_params = [{transform_indices = @transform_0, window_bounds = array<i64: 1, 8, 32>}, {pipeline_mode = #tpu.pipeline_mode<synchronous>, transform_indices = @transform_1, window_bounds = array<i64: 32, 96>}, {pipeline_mode = #tpu.pipeline_mode<synchronous>, transform_indices = @transform_2, window_bounds = array<i64: 1, 96>}, {pipeline_mode = #tpu.pipeline_mode<synchronous>, transform_indices = @transform_3, window_bounds = array<i64: 32, 32>}, {pipeline_mode = #tpu.pipeline_mode<synchronous>, transform_indices = @transform_4, window_bounds = array<i64: 1, 32>}, {transform_indices = @transform_5, window_bounds = array<i64: 1, 8, 32>}]} {
    %c0 = arith.constant 0 : index
    %c0_0 = arith.constant 0 : index
    %c0_1 = arith.constant 0 : index
    %0 = vector.load %arg1[%c0, %c0_0, %c0_1] : memref<1x8x32xbf16, #tpu.memory_space<vmem>>, vector<1x8x32xbf16>
    %1 = vector.shape_cast %0 : vector<1x8x32xbf16> to vector<8x32xbf16>
    %c0_2 = arith.constant 0 : index
    %c0_3 = arith.constant 0 : index
    %2 = vector.load %arg2[%c0_2, %c0_3] : memref<32x96xbf16, #tpu.memory_space<vmem>>, vector<32x96xbf16>
    %cst = arith.constant dense<0.000000e+00> : vector<8x96xf32>
    %3 = tpu.matmul %1, %2, %cst {dimension_numbers = #tpu.dot_dimension_numbers<[1], [0], [0], [1], [0, 0, 1, 1], [], []>} : vector<8x32xbf16>, vector<32x96xbf16>, vector<8x96xf32> -> vector<8x96xf32>
    %c0_4 = arith.constant 0 : index
    %c0_5 = arith.constant 0 : index
    %4 = vector.load %arg3[%c0_4, %c0_5] : memref<1x96xf32, #tpu.memory_space<vmem>>, vector<1x96xf32>
    %5 = vector.broadcast %4 : vector<1x96xf32> to vector<8x96xf32>
    %6 = arith.addf %3, %5 : vector<8x96xf32>
    %7 = vector.extract_strided_slice %6 {offsets = [0, 0], sizes = [8, 8], strides = [1, 1]} : vector<8x96xf32> to vector<8x8xf32>
    %cst_6 = arith.constant 0.353553385 : f32
    %8 = vector.broadcast %cst_6 : f32 to vector<8x8xf32>
    %9 = arith.mulf %7, %8 : vector<8x8xf32>
    %10 = vector.extract_strided_slice %6 {offsets = [0, 32], sizes = [8, 8], strides = [1, 1]} : vector<8x96xf32> to vector<8x8xf32>
    %11 = vector.extract_strided_slice %6 {offsets = [0, 64], sizes = [8, 8], strides = [1, 1]} : vector<8x96xf32> to vector<8x8xf32>
    %12 = arith.truncf %9 : vector<8x8xf32> to vector<8x8xbf16>
    %13 = arith.truncf %10 : vector<8x8xf32> to vector<8x8xbf16>
    %cst_7 = arith.constant dense<0.000000e+00> : vector<8x8xf32>
    %14 = tpu.matmul %12, %13, %cst_7 {dimension_numbers = #tpu.dot_dimension_numbers<[1], [1], [0], [0], [0, 0, 1, 0], [], []>} : vector<8x8xbf16>, vector<8x8xbf16>, vector<8x8xf32> -> vector<8x8xf32>
    %cst_8 = arith.constant dense<0xFF800000> : vector<8xf32>
    %15 = vector.multi_reduction <maximumf>, %14, %cst_8 [0] : vector<8x8xf32> to vector<8xf32>
    %16 = vector.shape_cast %15 : vector<8xf32> to vector<1x8xf32>
    %17 = vector.broadcast %16 : vector<1x8xf32> to vector<8x8xf32>
    %18 = arith.subf %14, %17 : vector<8x8xf32>
    %19 = math.exp %18 : vector<8x8xf32>
    %cst_9 = arith.constant dense<0.000000e+00> : vector<8xf32>
    %20 = vector.multi_reduction <add>, %19, %cst_9 [0] : vector<8x8xf32> to vector<8xf32>
    %21 = vector.shape_cast %20 : vector<8xf32> to vector<1x8xf32>
    %22 = tpu.reciprocal %21 {approx = true} : vector<1x8xf32> -> vector<1x8xf32>
    %23 = vector.broadcast %22 : vector<1x8xf32> to vector<8x8xf32>
    %24 = arith.mulf %19, %23 : vector<8x8xf32>
    %25 = arith.truncf %24 : vector<8x8xf32> to vector<8x8xbf16>
    %26 = arith.truncf %11 : vector<8x8xf32> to vector<8x8xbf16>
    %cst_10 = arith.constant dense<0.000000e+00> : vector<8x8xf32>
    %27 = tpu.matmul %25, %26, %cst_10 {dimension_numbers = #tpu.dot_dimension_numbers<[1], [0], [0], [1], [0, 0, 1, 1], [], []>} : vector<8x8xbf16>, vector<8x8xbf16>, vector<8x8xf32> -> vector<8x8xf32>
    %c0_11 = arith.constant 0 : index
    %c0_12 = arith.constant 0 : index
    %28 = vector.load %arg7[%c0_11, %c0_12] : memref<8x32xf32, #tpu.memory_space<vmem>>, vector<8x8xf32>
    tpu.vector_store %arg7[%c0_11, %c0_12], %27 {strides = array<i32>} : memref<8x32xf32, #tpu.memory_space<vmem>>, vector<8x8xf32>,
    %29 = vector.extract_strided_slice %6 {offsets = [0, 8], sizes = [8, 8], strides = [1, 1]} : vector<8x96xf32> to vector<8x8xf32>
    %cst_13 = arith.constant 0.353553385 : f32
    %30 = vector.broadcast %cst_13 : f32 to vector<8x8xf32>
    %31 = arith.mulf %29, %30 : vector<8x8xf32>
    %32 = vector.extract_strided_slice %6 {offsets = [0, 40], sizes = [8, 8], strides = [1, 1]} : vector<8x96xf32> to vector<8x8xf32>
    %33 = vector.extract_strided_slice %6 {offsets = [0, 72], sizes = [8, 8], strides = [1, 1]} : vector<8x96xf32> to vector<8x8xf32>
    %34 = arith.truncf %31 : vector<8x8xf32> to vector<8x8xbf16>
    %35 = arith.truncf %32 : vector<8x8xf32> to vector<8x8xbf16>
    %cst_14 = arith.constant dense<0.000000e+00> : vector<8x8xf32>
    %36 = tpu.matmul %34, %35, %cst_14 {dimension_numbers = #tpu.dot_dimension_numbers<[1], [1], [0], [0], [0, 0, 1, 0], [], []>} : vector<8x8xbf16>, vector<8x8xbf16>, vector<8x8xf32> -> vector<8x8xf32>
    %cst_15 = arith.constant dense<0xFF800000> : vector<8xf32>
    %37 = vector.multi_reduction <maximumf>, %36, %cst_15 [0] : vector<8x8xf32> to vector<8xf32>
    %38 = vector.shape_cast %37 : vector<8xf32> to vector<1x8xf32>
    %39 = vector.broadcast %38 : vector<1x8xf32> to vector<8x8xf32>
    %40 = arith.subf %36, %39 : vector<8x8xf32>
    %41 = math.exp %40 : vector<8x8xf32>
    %cst_16 = arith.constant dense<0.000000e+00> : vector<8xf32>
    %42 = vector.multi_reduction <add>, %41, %cst_16 [0] : vector<8x8xf32> to vector<8xf32>
    %43 = vector.shape_cast %42 : vector<8xf32> to vector<1x8xf32>
    %44 = tpu.reciprocal %43 {approx = true} : vector<1x8xf32> -> vector<1x8xf32>
    %45 = vector.broadcast %44 : vector<1x8xf32> to vector<8x8xf32>
    %46 = arith.mulf %41, %45 : vector<8x8xf32>
    %47 = arith.truncf %46 : vector<8x8xf32> to vector<8x8xbf16>
    %48 = arith.truncf %33 : vector<8x8xf32> to vector<8x8xbf16>
    %cst_17 = arith.constant dense<0.000000e+00> : vector<8x8xf32>
    %49 = tpu.matmul %47, %48, %cst_17 {dimension_numbers = #tpu.dot_dimension_numbers<[1], [0], [0], [1], [0, 0, 1, 1], [], []>} : vector<8x8xbf16>, vector<8x8xbf16>, vector<8x8xf32> -> vector<8x8xf32>
    %c0_18 = arith.constant 0 : index
    %c8 = arith.constant 8 : index
    %50 = vector.load %arg7[%c0_18, %c8] : memref<8x32xf32, #tpu.memory_space<vmem>>, vector<8x8xf32>
    tpu.vector_store %arg7[%c0_18, %c8], %49 {strides = array<i32>} : memref<8x32xf32, #tpu.memory_space<vmem>>, vector<8x8xf32>,
    %51 = vector.extract_strided_slice %6 {offsets = [0, 16], sizes = [8, 8], strides = [1, 1]} : vector<8x96xf32> to vector<8x8xf32>
    %cst_19 = arith.constant 0.353553385 : f32
    %52 = vector.broadcast %cst_19 : f32 to vector<8x8xf32>
    %53 = arith.mulf %51, %52 : vector<8x8xf32>
    %54 = vector.extract_strided_slice %6 {offsets = [0, 48], sizes = [8, 8], strides = [1, 1]} : vector<8x96xf32> to vector<8x8xf32>
    %55 = vector.extract_strided_slice %6 {offsets = [0, 80], sizes = [8, 8], strides = [1, 1]} : vector<8x96xf32> to vector<8x8xf32>
    %56 = arith.truncf %53 : vector<8x8xf32> to vector<8x8xbf16>
    %57 = arith.truncf %54 : vector<8x8xf32> to vector<8x8xbf16>
    %cst_20 = arith.constant dense<0.000000e+00> : vector<8x8xf32>
    %58 = tpu.matmul %56, %57, %cst_20 {dimension_numbers = #tpu.dot_dimension_numbers<[1], [1], [0], [0], [0, 0, 1, 0], [], []>} : vector<8x8xbf16>, vector<8x8xbf16>, vector<8x8xf32> -> vector<8x8xf32>
    %cst_21 = arith.constant dense<0xFF800000> : vector<8xf32>
    %59 = vector.multi_reduction <maximumf>, %58, %cst_21 [0] : vector<8x8xf32> to vector<8xf32>
    %60 = vector.shape_cast %59 : vector<8xf32> to vector<1x8xf32>
    %61 = vector.broadcast %60 : vector<1x8xf32> to vector<8x8xf32>
    %62 = arith.subf %58, %61 : vector<8x8xf32>
    %63 = math.exp %62 : vector<8x8xf32>
    %cst_22 = arith.constant dense<0.000000e+00> : vector<8xf32>
    %64 = vector.multi_reduction <add>, %63, %cst_22 [0] : vector<8x8xf32> to vector<8xf32>
    %65 = vector.shape_cast %64 : vector<8xf32> to vector<1x8xf32>
    %66 = tpu.reciprocal %65 {approx = true} : vector<1x8xf32> -> vector<1x8xf32>
    %67 = vector.broadcast %66 : vector<1x8xf32> to vector<8x8xf32>
    %68 = arith.mulf %63, %67 : vector<8x8xf32>
    %69 = arith.truncf %68 : vector<8x8xf32> to vector<8x8xbf16>
    %70 = arith.truncf %55 : vector<8x8xf32> to vector<8x8xbf16>
    %cst_23 = arith.constant dense<0.000000e+00> : vector<8x8xf32>
    %71 = tpu.matmul %69, %70, %cst_23 {dimension_numbers = #tpu.dot_dimension_numbers<[1], [0], [0], [1], [0, 0, 1, 1], [], []>} : vector<8x8xbf16>, vector<8x8xbf16>, vector<8x8xf32> -> vector<8x8xf32>
    %c0_24 = arith.constant 0 : index
    %c16 = arith.constant 16 : index
    %72 = vector.load %arg7[%c0_24, %c16] : memref<8x32xf32, #tpu.memory_space<vmem>>, vector<8x8xf32>
    tpu.vector_store %arg7[%c0_24, %c16], %71 {strides = array<i32>} : memref<8x32xf32, #tpu.memory_space<vmem>>, vector<8x8xf32>,
    %73 = vector.extract_strided_slice %6 {offsets = [0, 24], sizes = [8, 8], strides = [1, 1]} : vector<8x96xf32> to vector<8x8xf32>
    %cst_25 = arith.constant 0.353553385 : f32
    %74 = vector.broadcast %cst_25 : f32 to vector<8x8xf32>
    %75 = arith.mulf %73, %74 : vector<8x8xf32>
    %76 = vector.extract_strided_slice %6 {offsets = [0, 56], sizes = [8, 8], strides = [1, 1]} : vector<8x96xf32> to vector<8x8xf32>
    %77 = vector.extract_strided_slice %6 {offsets = [0, 88], sizes = [8, 8], strides = [1, 1]} : vector<8x96xf32> to vector<8x8xf32>
    %78 = arith.truncf %75 : vector<8x8xf32> to vector<8x8xbf16>
    %79 = arith.truncf %76 : vector<8x8xf32> to vector<8x8xbf16>
    %cst_26 = arith.constant dense<0.000000e+00> : vector<8x8xf32>
    %80 = tpu.matmul %78, %79, %cst_26 {dimension_numbers = #tpu.dot_dimension_numbers<[1], [1], [0], [0], [0, 0, 1, 0], [], []>} : vector<8x8xbf16>, vector<8x8xbf16>, vector<8x8xf32> -> vector<8x8xf32>
    %cst_27 = arith.constant dense<0xFF800000> : vector<8xf32>
    %81 = vector.multi_reduction <maximumf>, %80, %cst_27 [0] : vector<8x8xf32> to vector<8xf32>
    %82 = vector.shape_cast %81 : vector<8xf32> to vector<1x8xf32>
    %83 = vector.broadcast %82 : vector<1x8xf32> to vector<8x8xf32>
    %84 = arith.subf %80, %83 : vector<8x8xf32>
    %85 = math.exp %84 : vector<8x8xf32>
    %cst_28 = arith.constant dense<0.000000e+00> : vector<8xf32>
    %86 = vector.multi_reduction <add>, %85, %cst_28 [0] : vector<8x8xf32> to vector<8xf32>
    %87 = vector.shape_cast %86 : vector<8xf32> to vector<1x8xf32>
    %88 = tpu.reciprocal %87 {approx = true} : vector<1x8xf32> -> vector<1x8xf32>
    %89 = vector.broadcast %88 : vector<1x8xf32> to vector<8x8xf32>
    %90 = arith.mulf %85, %89 : vector<8x8xf32>
    %91 = arith.truncf %90 : vector<8x8xf32> to vector<8x8xbf16>
    %92 = arith.truncf %77 : vector<8x8xf32> to vector<8x8xbf16>
    %cst_29 = arith.constant dense<0.000000e+00> : vector<8x8xf32>
    %93 = tpu.matmul %91, %92, %cst_29 {dimension_numbers = #tpu.dot_dimension_numbers<[1], [0], [0], [1], [0, 0, 1, 1], [], []>} : vector<8x8xbf16>, vector<8x8xbf16>, vector<8x8xf32> -> vector<8x8xf32>
    %c0_30 = arith.constant 0 : index
    %c24 = arith.constant 24 : index
    %94 = vector.load %arg7[%c0_30, %c24] : memref<8x32xf32, #tpu.memory_space<vmem>>, vector<8x8xf32>
    tpu.vector_store %arg7[%c0_30, %c24], %93 {strides = array<i32>} : memref<8x32xf32, #tpu.memory_space<vmem>>, vector<8x8xf32>,
    %c0_31 = arith.constant 0 : index
    %c0_32 = arith.constant 0 : index
    %95 = vector.load %arg7[%c0_31, %c0_32] : memref<8x32xf32, #tpu.memory_space<vmem>>, vector<8x32xf32>
    %96 = arith.truncf %95 : vector<8x32xf32> to vector<8x32xbf16>
    %c0_33 = arith.constant 0 : index
    %c0_34 = arith.constant 0 : index
    %97 = vector.load %arg4[%c0_33, %c0_34] : memref<32x32xbf16, #tpu.memory_space<vmem>>, vector<32x32xbf16>
    %cst_35 = arith.constant dense<0.000000e+00> : vector<8x32xf32>
    %98 = tpu.matmul %96, %97, %cst_35 {dimension_numbers = #tpu.dot_dimension_numbers<[1], [0], [0], [1], [0, 0, 1, 1], [], []>} : vector<8x32xbf16>, vector<32x32xbf16>, vector<8x32xf32> -> vector<8x32xf32>
    %c0_36 = arith.constant 0 : index
    %c0_37 = arith.constant 0 : index
    %99 = vector.load %arg5[%c0_36, %c0_37] : memref<1x32xf32, #tpu.memory_space<vmem>>, vector<1x32xf32>
    %100 = vector.broadcast %99 : vector<1x32xf32> to vector<8x32xf32>
    %101 = arith.addf %98, %100 : vector<8x32xf32>
    %c0_38 = arith.constant 0 : index
    %c0_39 = arith.constant 0 : index
    %c0_40 = arith.constant 0 : index
    %102 = vector.load %arg6[%c0_38, %c0_39, %c0_40] : memref<1x8x32xf32, #tpu.memory_space<vmem>>, vector<1x8x32xf32>
    %103 = vector.shape_cast %102 : vector<1x8x32xf32> to vector<8x32xf32>
    %104 = vector.shape_cast %101 : vector<8x32xf32> to vector<1x8x32xf32>
    tpu.vector_store %arg6[%c0_38, %c0_39, %c0_40], %104 {strides = array<i32>} : memref<1x8x32xf32, #tpu.memory_space<vmem>>, vector<1x8x32xf32>,
    return
  }
  func.func @transform_0(%arg0: i32) -> (i32, i32, i32) {
    %c0_i32 = arith.constant 0 : i32
    %c0_i32_0 = arith.constant 0 : i32
    %c0_i32_1 = arith.constant 0 : i32
    return %arg0, %c0_i32, %c0_i32_0 : i32, i32, i32
  }
  func.func @transform_1(%arg0: i32) -> (i32, i32) {
    %c0_i32 = arith.constant 0 : i32
    %c0_i32_0 = arith.constant 0 : i32
    %c0_i32_1 = arith.constant 0 : i32
    return %c0_i32, %c0_i32_0 : i32, i32
  }
  func.func @transform_2(%arg0: i32) -> (i32, i32) {
    %c0_i32 = arith.constant 0 : i32
    %c0_i32_0 = arith.constant 0 : i32
    %c0_i32_1 = arith.constant 0 : i32
    return %c0_i32, %c0_i32_0 : i32, i32
  }
  func.func @transform_3(%arg0: i32) -> (i32, i32) {
    %c0_i32 = arith.constant 0 : i32
    %c0_i32_0 = arith.constant 0 : i32
    %c0_i32_1 = arith.constant 0 : i32
    return %c0_i32, %c0_i32_0 : i32, i32
  }
  func.func @transform_4(%arg0: i32) -> (i32, i32) {
    %c0_i32 = arith.constant 0 : i32
    %c0_i32_0 = arith.constant 0 : i32
    %c0_i32_1 = arith.constant 0 : i32
    return %c0_i32, %c0_i32_0 : i32, i32
  }
  func.func @transform_5(%arg0: i32) -> (i32, i32, i32) {
    %c0_i32 = arith.constant 0 : i32
    %c0_i32_0 = arith.constant 0 : i32
    %c0_i32_1 = arith.constant 0 : i32
    return %arg0, %c0_i32, %c0_i32_0 : i32, i32, i32
  }
}

</mosaic_0001>

<llo_original>
// kernel: tpu_custom_call.1
$region0: #{tpu_custom_call.1}
  #allocation0 [shape = 'u32[]', space=smem, size = 0x4, offset = 0x4, fixed_abs, tag = 'smem constant byte address 0x4 - core index']
  #allocation1 [shape = 'u32[144,128]{1,0:T(1,128)}', space=vmem, size = 0x12000, scoped, tag = 'internal scratch']
  #allocation2 [shape = 'f32[8,32]{1,0:T(8,128)}', space=vmem, size = 0x1000, scoped, tag = 'scratch operand']
  %s0 = inlined_call_operand.hbm [shape: bf16[2,8,32], index: 0, kind: input, shape index: {}]
  %s1 = inlined_call_operand.hbm [shape: bf16[32,96], index: 1, kind: input, shape index: {}]
  %s2 = inlined_call_operand.vmem [shape: f32[1,96], index: 2, kind: input, shape index: {}]
  %s3 = inlined_call_operand.hbm [shape: bf16[32,32], index: 3, kind: input, shape index: {}]
  %s4 = inlined_call_operand.vmem [shape: f32[1,32], index: 4, kind: input, shape index: {}]
  %s5 = inlined_call_operand.hbm [shape: f32[2,8,32], index: 5, kind: output, shape index: {}]
  %s6 = sld [smem:[#allocation0]]
  $region65: #{tpu_custom_call.1} parent=0
    _
  %s8 = ssub.s32 1, %s6
  %s9 = scalar_select 0, %s8, %s6
  $region1: #{tpu_custom_call.1} parent=0
    #allocation3 [shape = 'u8[4096]{0}', space=vmem, size = 0x1000, scoped, tag = 'input window, operand 0']
    #allocation4 [shape = 's32[2]{0}', space=sflag, size = 0x8, scoped, tag = 'scoped memory for tpu_custom_call.1']
    #allocation5 [shape = 's32[2]{0}', space=sflag, size = 0x8, scoped, tag = 'scoped memory for tpu_custom_call.1']
    #allocation6 [shape = 'u8[8192]{0}', space=vmem, size = 0x2000, scoped, tag = 'input window, operand 1, single buffered']
    #allocation7 [shape = 's32[1]{0}', space=sflag, size = 0x4, scoped, tag = 'scoped memory for tpu_custom_call.1']
    #allocation8 [shape = 'u8[8192]{0}', space=vmem, size = 0x2000, scoped, tag = 'input window, operand 3, single buffered']
    #allocation9 [shape = 'u8[8192]{0}', space=vmem, size = 0x2000, scoped, tag = 'output window, operand 0']
    %10 = vsyncpa [#allocation4], 0
    %s11 = scalar_lea.sflag [#allocation4], 1
    %12 = vsyncpa %s11, 0
    %13 = vsyncpa [#allocation7], 0
    %14 = vsyncpa [#allocation5], 0
    %s15 = scalar_lea.sflag [#allocation5], 1
    %16 = vsyncpa %s15, 0
    loop: start=0, step=1, limit=4
    $region2: #{tpu_custom_call.1} parent=1 // loop_pre_header
      _
    $region3: #{tpu_custom_call.1} parent=1 // loop_header
      %s18 = sphi 0, %s22
      %p19 = scmp.ge.s32.totalorder %s18, 4
      %s28 = sphi 0, %s30
      %s31 = sphi 0, %s28
      %s32 = sphi 0, %s31
      %s48 = sphi 0, %s32
      %s52 = sphi 0, %s52
      %s54 = sphi 0, %s52
      %s55 = sphi 0, %s54
      %s69 = sphi 0, %s55
      %s73 = sphi 0, %s73
      %s75 = sphi 0, %s73
      %s76 = sphi 0, %s75
      %s90 = sphi 0, %s76
      %s94 = sphi 0, %s94
      %s96 = sphi 0, %s94
      %s97 = sphi 0, %s96
      %s111 = sphi 0, %s97
      %s115 = sphi 0, %s115
      %s117 = sphi 0, %s115
      %s118 = sphi 0, %s117
      %s132 = sphi 0, %s118
      %s138 = sphi 0, %s140
      %s141 = sphi 0, %s138
      %s142 = sphi 0, %s141
      %s158 = sphi 0, %s142
    $region4: #{tpu_custom_call.1} parent=1 // loop_header_branch
      %21 = sbr.rel (%p19) target = $region8
    $region5: #{tpu_custom_call.1} parent=1 // loop_body
      %s23 = ssub.s32 %s18, 1
      %s24 = ssub.s32 %s18, 2
      %s25 = sadd.s32 %s18, 1
      %s26 = ssub.s32 %s18, %s25
      %p27 = scmp.eq.s32.totalorder %s26, 0
      %s29 = sadd.s32 %s28, 1
      %s30 = scalar_select %p27, %s28, %s29
      %p33 = pneg %p27
      %p34 = scmp.eq.s32.totalorder %s18, 1
      %p35 = por %p33, %p34
      %p36 = scmp.ne.s32.totalorder %s28, %s31
      %p37 = scmp.eq.s32.totalorder %s18, 0
      %p38 = por %p36, %p37
      %p39 = scmp.ne.s32.totalorder %s28, %s31
      %p40 = scmp.eq.s32.totalorder %s23, 1
      %p41 = por %p39, %p40
      %p42 = scmp.ne.s32.totalorder %s31, %s32
      %p43 = scmp.eq.s32.totalorder %s23, 0
      %p44 = por %p42, %p43
      %p45 = scmp.ne.s32.totalorder %s31, %s32
      %p46 = scmp.eq.s32.totalorder %s24, 1
      %p47 = por %p45, %p46
      %p49 = scmp.ne.s32.totalorder %s32, %s48
      %p50 = scmp.eq.s32.totalorder %s24, 0
      %p51 = por %p49, %p50
      %s53 = sadd.s32 %s52, 1
      %p56 = scmp.eq.s32.totalorder %s18, 1
      %p57 = scmp.ne.s32.totalorder %s52, %s54
      %p58 = scmp.eq.s32.totalorder %s18, 0
      %p59 = por %p57, %p58
      %p60 = scmp.ne.s32.totalorder %s52, %s54
      %p61 = scmp.eq.s32.totalorder %s23, 1
      %p62 = por %p60, %p61
      %p63 = scmp.ne.s32.totalorder %s54, %s55
      %p64 = scmp.eq.s32.totalorder %s23, 0
      %p65 = por %p63, %p64
      %p66 = scmp.ne.s32.totalorder %s54, %s55
      %p67 = scmp.eq.s32.totalorder %s24, 1
      %p68 = por %p66, %p67
      %p70 = scmp.ne.s32.totalorder %s55, %s69
      %p71 = scmp.eq.s32.totalorder %s24, 0
      %p72 = por %p70, %p71
      %s74 = sadd.s32 %s73, 1
      %p77 = scmp.eq.s32.totalorder %s18, 1
      %p78 = scmp.ne.s32.totalorder %s73, %s75
      %p79 = scmp.eq.s32.totalorder %s18, 0
      %p80 = por %p78, %p79
      %p81 = scmp.ne.s32.totalorder %s73, %s75
      %p82 = scmp.eq.s32.totalorder %s23, 1
      %p83 = por %p81, %p82
      %p84 = scmp.ne.s32.totalorder %s75, %s76
      %p85 = scmp.eq.s32.totalorder %s23, 0
      %p86 = por %p84, %p85
      %p87 = scmp.ne.s32.totalorder %s75, %s76
      %p88 = scmp.eq.s32.totalorder %s24, 1
      %p89 = por %p87, %p88
      %p91 = scmp.ne.s32.totalorder %s76, %s90
      %p92 = scmp.eq.s32.totalorder %s24, 0
      %p93 = por %p91, %p92
      %s95 = sadd.s32 %s94, 1
      %p98 = scmp.eq.s32.totalorder %s18, 1
      %p99 = scmp.ne.s32.totalorder %s94, %s96
      %p100 = scmp.eq.s32.totalorder %s18, 0
      %p101 = por %p99, %p100
      %p102 = scmp.ne.s32.totalorder %s94, %s96
      %p103 = scmp.eq.s32.totalorder %s23, 1
      %p104 = por %p102, %p103
      %p105 = scmp.ne.s32.totalorder %s96, %s97
      %p106 = scmp.eq.s32.totalorder %s23, 0
      %p107 = por %p105, %p106
      %p108 = scmp.ne.s32.totalorder %s96, %s97
      %p109 = scmp.eq.s32.totalorder %s24, 1
      %p110 = por %p108, %p109
      %p112 = scmp.ne.s32.totalorder %s97, %s111
      %p113 = scmp.eq.s32.totalorder %s24, 0
      %p114 = por %p112, %p113
      %s116 = sadd.s32 %s115, 1
      %p119 = scmp.eq.s32.totalorder %s18, 1
      %p120 = scmp.ne.s32.totalorder %s115, %s117
      %p121 = scmp.eq.s32.totalorder %s18, 0
      %p122 = por %p120, %p121
      %p123 = scmp.ne.s32.totalorder %s115, %s117
      %p124 = scmp.eq.s32.totalorder %s23, 1
      %p125 = por %p123, %p124
      %p126 = scmp.ne.s32.totalorder %s117, %s118
      %p127 = scmp.eq.s32.totalorder %s23, 0
      %p128 = por %p126, %p127
      %p129 = scmp.ne.s32.totalorder %s117, %s118
      %p130 = scmp.eq.s32.totalorder %s24, 1
      %p131 = por %p129, %p130
      %p133 = scmp.ne.s32.totalorder %s118, %s132
      %p134 = scmp.eq.s32.totalorder %s24, 0
      %p135 = por %p133, %p134
      %s136 = ssub.s32 %s18, %s25
      %p137 = scmp.eq.s32.totalorder %s136, 0
      %s139 = sadd.s32 %s138, 1
      %s140 = scalar_select %p137, %s138, %s139
      %p143 = pneg %p137
      %p144 = scmp.eq.s32.totalorder %s18, 1
      %p145 = por %p143, %p144
      %p146 = scmp.ne.s32.totalorder %s138, %s141
      %p147 = scmp.eq.s32.totalorder %s18, 0
      %p148 = por %p146, %p147
      %p149 = scmp.ne.s32.totalorder %s138, %s141
      %p150 = scmp.eq.s32.totalorder %s23, 1
      %p151 = por %p149, %p150
      %p152 = scmp.ne.s32.totalorder %s141, %s142
      %p153 = scmp.eq.s32.totalorder %s23, 0
      %p154 = por %p152, %p153
      %p155 = scmp.ne.s32.totalorder %s141, %s142
      %p156 = scmp.eq.s32.totalorder %s24, 1
      %p157 = por %p155, %p156
      %p159 = scmp.ne.s32.totalorder %s142, %s158
      %p160 = scmp.eq.s32.totalorder %s24, 0
      %p161 = por %p159, %p160
      %p162 = scmp.le.s32.totalorder 1, %s18
      %p163 = scmp.lt.s32.totalorder %s18, 3
      %p164 = pnand %p162, %p163
      %p165 = pneg %p164
      // Predicated region
      $region9: #{tpu_custom_call.1} parent=5 // pred_check
        _
      $region10: #{tpu_custom_call.1} parent=5 // pred_check_branch
        %167 = sbr.rel (%p164) target = $region12
      $region11: #{tpu_custom_call.1} parent=5 // pred_region
        %s168 = ssub.s32 %s18, 1
        // Predicated region
        $region13: #{tpu_custom_call.1} parent=11 // pred_check
          %p169 = pneg %p65
        $region14: #{tpu_custom_call.1} parent=11 // pred_check_branch
          %171 = sbr.rel (%p169) target = $region16
        $region15: #{tpu_custom_call.1} parent=11 // pred_region
          %s173 = ssub.s32 256, 256
          %174 = vsyncadd [#allocation7], %s173
          %s175 = sshll.u32 [#allocation6], 4
          %s176 = int_to_ptr.vmem [resolvable:$true] %s175
          %181 = dma.hbm_to_vmem [thread:$0]  %s1, 256, %s176, [#allocation7], 64, 64, 4
        $region16: #{tpu_custom_call.1} parent=11 // pred_fallthru
          _
        // Predicated region
        $region17: #{tpu_custom_call.1} parent=11 // pred_check
          %p182 = pneg %p86
        $region18: #{tpu_custom_call.1} parent=11 // pred_check_branch
          %184 = sbr.rel (%p182) target = $region20
        $region19: #{tpu_custom_call.1} parent=11 // pred_region
          _
        $region20: #{tpu_custom_call.1} parent=11 // pred_fallthru
          _
        // Predicated region
        $region21: #{tpu_custom_call.1} parent=11 // pred_check
          %p185 = pneg %p107
        $region22: #{tpu_custom_call.1} parent=11 // pred_check_branch
          %187 = sbr.rel (%p185) target = $region24
        $region23: #{tpu_custom_call.1} parent=11 // pred_region
          %s189 = ssub.s32 256, 256
          %190 = vsyncadd [#allocation7], %s189
          %s191 = sshll.u32 [#allocation8], 4
          %s192 = int_to_ptr.vmem [resolvable:$true] %s191
          %197 = dma.hbm_to_vmem [thread:$0]  %s3, 256, %s192, [#allocation7], 64, 64, 4
        $region24: #{tpu_custom_call.1} parent=11 // pred_fallthru
          _
        // Predicated region
        $region25: #{tpu_custom_call.1} parent=11 // pred_check
          %p198 = pneg %p128
        $region26: #{tpu_custom_call.1} parent=11 // pred_check_branch
          %200 = sbr.rel (%p198) target = $region28
        $region27: #{tpu_custom_call.1} parent=11 // pred_region
          _
        $region28: #{tpu_custom_call.1} parent=11 // pred_fallthru
          _
      $region12: #{tpu_custom_call.1} parent=5 // pred_fallthru
        _
      %p201 = scmp.lt.s32.totalorder %s18, 2
      // Predicated region
      $region29: #{tpu_custom_call.1} parent=5 // pred_check
        %p202 = pneg %p201
      $region30: #{tpu_custom_call.1} parent=5 // pred_check_branch
        %204 = sbr.rel (%p202) target = $region32
      $region31: #{tpu_custom_call.1} parent=5 // pred_region
        // Predicated region
        $region33: #{tpu_custom_call.1} parent=31 // pred_check
          %p205 = pneg %p38
        $region34: #{tpu_custom_call.1} parent=31 // pred_check_branch
          %207 = sbr.rel (%p205) target = $region36
        $region35: #{tpu_custom_call.1} parent=31 // pred_region
          %s208 = sand.u32 %s28, 1
          %s209 = scalar_lea.sflag [#allocation4], %s208
          %s210 = sand.u32 %s28, 1
          %s211 = smul.addr %s210, 4
          %s212 = scalar_lea.vmem [#allocation3], %s211
          %s214 = ssub.s32 64, 64
          %215 = vsyncadd %s209, %s214
          %s216 = smul.addr %s18, 64
          %s217 = scalar_lea.hbm %s0, %s216
          %s219 = sshll.u32 %s212, 4
          %s220 = int_to_ptr.vmem [resolvable:$true] %s219
          %222 = dma.hbm_to_vmem [thread:$0]  %s217, 64, %s220, %s209
        $region36: #{tpu_custom_call.1} parent=31 // pred_fallthru
          _
      $region32: #{tpu_custom_call.1} parent=5 // pred_fallthru
        _
      %p223 = scmp.le.s32.totalorder 1, %s18
      %p224 = scmp.lt.s32.totalorder %s18, 3
      %p225 = pnand %p223, %p224
      %p226 = pneg %p225
      // Predicated region
      $region37: #{tpu_custom_call.1} parent=5 // pred_check
        _
      $region38: #{tpu_custom_call.1} parent=5 // pred_check_branch
        %228 = sbr.rel (%p225) target = $region40
      $region39: #{tpu_custom_call.1} parent=5 // pred_region
        %s229 = ssub.s32 %s18, 1
        %s230 = sand.u32 %s31, 1
        %s231 = scalar_lea.sflag [#allocation4], %s230
        %s232 = sand.u32 %s31, 1
        %s233 = smul.addr %s232, 4
        %s234 = scalar_lea.vmem [#allocation3], %s233
        // Predicated region
        $region41: #{tpu_custom_call.1} parent=39 // pred_check
          %p235 = pneg %p44
        $region42: #{tpu_custom_call.1} parent=39 // pred_check_branch
          %237 = sbr.rel (%p235) target = $region44
        $region43: #{tpu_custom_call.1} parent=39 // pred_region
          %238 = dma.done %s231, 64
        $region44: #{tpu_custom_call.1} parent=39 // pred_fallthru
          _
        // Predicated region
        $region45: #{tpu_custom_call.1} parent=39 // pred_check
          %p239 = pneg %p65
        $region46: #{tpu_custom_call.1} parent=39 // pred_check_branch
          %241 = sbr.rel (%p239) target = $region48
        $region47: #{tpu_custom_call.1} parent=39 // pred_region
          %242 = dma.done [#allocation7], 256
        $region48: #{tpu_custom_call.1} parent=39 // pred_fallthru
          _
        // Predicated region
        $region49: #{tpu_custom_call.1} parent=39 // pred_check
          %p243 = pneg %p107
        $region50: #{tpu_custom_call.1} parent=39 // pred_check_branch
          %245 = sbr.rel (%p243) target = $region52
        $region51: #{tpu_custom_call.1} parent=39 // pred_region
          %246 = dma.done [#allocation7], 256
        $region52: #{tpu_custom_call.1} parent=39 // pred_fallthru
          _
        %s247 = sand.u32 %s31, 1
        %s248 = scalar_lea.sflag [#allocation4], %s247
        %s249 = sand.u32 %s31, 1
        %s250 = smul.addr %s249, 4
        %s251 = scalar_lea.vmem [#allocation3], %s250
        %p252 = pneg %p44
        %p253 = pneg %p41
        %p254 = pneg %p65
        %p255 = pneg %p62
        %p256 = pneg %p86
        %p257 = pneg %p83
        %p258 = pneg %p107
        %p259 = pneg %p104
        %p260 = pneg %p128
        %p261 = pneg %p125
        %p262 = pneg %p154
        %p263 = pneg %p151
        %s264 = sand.u32 %s141, 1
        %s265 = scalar_lea.sflag [#allocation5], %s264
        %s266 = sand.u32 %s141, 1
        %s267 = smul.addr %s266, 8
        %s268 = scalar_lea.vmem [#allocation9], %s267
        %v270 = vld [vmem:[%s234] sm:$0xf]
        %v271 = vld [vmem:[#allocation6] sm:$0xf]
        %v272 = vld [vmem:[#allocation6 + $0x4] sm:$0xf]
        %v273 = vld [vmem:[#allocation6 + $0x8] sm:$0xf]
        %v274 = vld [vmem:[#allocation6 + $0xc] sm:$0xf]
        %v275 = vld [vmem:[%s2] sm:$0x1]
        %v277 = vlaneseq
        %v278 = vshrl.u32 %v277, 7
        %v279 = vsub.s32 0, %v278
        %v280 = vrot.slane %v275, %v279
        %v286 = vunpack.c.l.b16 %v271
        %v287 = vunpack.c.l.b16 %v272
        %v288 = vunpack.c.l.b16 %v273
        %v289 = vunpack.c.l.b16 %v274
        %v290 = vpack.c.b16 %v287, %v286
        %v291 = vpack.c.b16 %v289, %v288
        %vm294 = vcmask 261120
        %v296 = vsel %vm294, %v270, 0
        %298 = vmatprep.subr.bf16.mxu0 0
        %299 = vmatpush1.bf16.msra.mxu0 %v290
        %300 = vmatprep.subr.bf16.mxu0 0
        %301 = vmatpush1.bf16.msra.mxu0 %v291
        %302 = vmatprep.subr.bf16.mxu0 0
        %303 = vmatpush1.bf16.msra.mxu0 0
        %304 = vmatprep.subr.bf16.mxu0 0
        %305 = vmatpush1.bf16.msra.mxu0 0
        %306 = vmatprep.subr.bf16.mxu0 0
        %307 = vmatpush1.bf16.msra.mxu0 0
        %308 = vmatprep.subr.bf16.mxu0 0
        %309 = vmatpush1.bf16.msra.mxu0 0
        %310 = vmatprep.subr.bf16.mxu0 0
        %311 = vmatpush1.bf16.msra.mxu0 0
        %312 = vmatprep.subr.bf16.mxu0 0
        %313 = vmatpush1.bf16.msra.mxu0 0
        %314 = vmatprep.subr.bf16.mxu0 0
        %315 = vmatpush1.bf16.msra.mxu0 0
        %316 = vmatprep.subr.bf16.mxu0 0
        %317 = vmatpush1.bf16.msra.mxu0 0
        %318 = vmatprep.subr.bf16.mxu0 0
        %319 = vmatpush1.bf16.msra.mxu0 0
        %320 = vmatprep.subr.bf16.mxu0 0
        %321 = vmatpush1.bf16.msra.mxu0 0
        %322 = vmatprep.subr.bf16.mxu0 0
        %323 = vmatpush1.bf16.msra.mxu0 0
        %324 = vmatprep.subr.bf16.mxu0 0
        %325 = vmatpush1.bf16.msra.mxu0 0
        %326 = vmatprep.subr.bf16.mxu0 0
        %327 = vmatpush1.bf16.msra.mxu0 0
        %328 = vmatprep.subr.bf16.mxu0 0
        %329 = vmatpush1.bf16.msra.mxu0 0
        %330 = vmatprep.mubr.bf16.mxu0 0
        %331 = vmatmul.mubr.bf16.gmra.mrb[0].mxu0 %v296
        %v332 = vpop.f32.mrb[0].mxu0
        %v333 = vadd.f32 %v280, %v332
        %v334 = vpop.f32.mrb[0].mxu0
        %v335 = vpop.f32.mrb[0].mxu0
        %v336 = vpop.f32.mrb[0].mxu0
        %337 = vdwg.mxu0
        %v338 = vmul.f32 %v333, 0.35355338
        %v339 = vpack.c.bf16 %v338, %v338
        %v340 = vpack.c.bf16 %v333, %v333
        %342 = vrot.lane.b32.xlu0 %v340, 96
        %v343 = vpop.permute.xlu0 %342
        %vm344 = vcmask 64512
        %v346 = vsel %vm344, %v339, 0
        %v349 = vsel %vm344, %v343, 0
        %351 = vmatprep.subr.bf16.mxu0 0
        %352 = vmatpush1.bf16.xpose.msra.mxu0 %v349
        %353 = vmatprep.subr.bf16.mxu0 0
        %354 = vmatpush1.bf16.xpose.msra.mxu0 0
        %355 = vmatprep.subr.bf16.mxu0 0
        %356 = vmatpush1.bf16.xpose.msra.mxu0 0
        %357 = vmatprep.subr.bf16.mxu0 0
        %358 = vmatpush1.bf16.xpose.msra.mxu0 0
        %359 = vmatprep.subr.bf16.mxu0 0
        %360 = vmatpush1.bf16.xpose.msra.mxu0 0
        %361 = vmatprep.subr.bf16.mxu0 0
        %362 = vmatpush1.bf16.xpose.msra.mxu0 0
        %363 = vmatprep.subr.bf16.mxu0 0
        %364 = vmatpush1.bf16.xpose.msra.mxu0 0
        %365 = vmatprep.subr.bf16.mxu0 0
        %366 = vmatpush1.bf16.xpose.msra.mxu0 0
        %367 = vmatprep.subr.bf16.mxu0 0
        %368 = vmatpush1.bf16.xpose.msra.mxu0 0
        %369 = vmatprep.subr.bf16.mxu0 0
        %370 = vmatpush1.bf16.xpose.msra.mxu0 0
        %371 = vmatprep.subr.bf16.mxu0 0
        %372 = vmatpush1.bf16.xpose.msra.mxu0 0
        %373 = vmatprep.subr.bf16.mxu0 0
        %374 = vmatpush1.bf16.xpose.msra.mxu0 0
        %375 = vmatprep.subr.bf16.mxu0 0
        %376 = vmatpush1.bf16.xpose.msra.mxu0 0
        %377 = vmatprep.subr.bf16.mxu0 0
        %378 = vmatpush1.bf16.xpose.msra.mxu0 0
        %379 = vmatprep.subr.bf16.mxu0 0
        %380 = vmatpush1.bf16.xpose.msra.mxu0 0
        %381 = vmatprep.subr.bf16.mxu0 0
        %382 = vmatpush1.bf16.xpose.msra.mxu0 0
        %383 = vmatprep.mubr.bf16.mxu0 0
        %384 = vmatmul.mubr.bf16.gmra.mrb[0].mxu0 %v346
        %v385 = vpop.f32.mrb[0].mxu0
        %v386 = vadd.f32 0.0, %v385
        %v387 = vpop.f32.mrb[0].mxu0
        %v388 = vpop.f32.mrb[0].mxu0
        %v389 = vpop.f32.mrb[0].mxu0
        %390 = vdwg.mxu0
        %v391 = vsel %vm344, %v386, -inf
        %v392 = vrot.slane %v391, 4
        %v393 = vmax.f32 %v391, %v392
        %v394 = vrot.slane %v393, 2
        %v395 = vmax.f32 %v393, %v394
        %v396 = vrot.slane %v395, 1
        %v397 = vmax.f32 %v395, %v396
        %v398 = vsub.f32 %v386, %v397
        %v399 = vmul.f32 %v398, 1.442695
        %v400 = vpow.pop %v399
        %v401 = vsel %vm344, %v400, 0.0
        %v402 = vrot.slane %v401, 4
        %v403 = vadd.f32 %v401, %v402
        %v404 = vrot.slane %v403, 2
        %v405 = vadd.f32 %v403, %v404
        %v406 = vrot.slane %v405, 1
        %v407 = vadd.f32 %v405, %v406
        %v408 = vrcp.pop %v407
        %v409 = vmul.f32 %v400, %v408
        %v410 = vpack.c.bf16 %v409, %v409
        %411 = vrot.lane.b32.xlu0 %v340, 64
        %v412 = vpop.permute.xlu0 %411
        %v414 = vsel %vm344, %v410, 0
        %vm416 = vcmask 1043456
        %v418 = vsel %vm416, %v412, 0
        %420 = vmatprep.subr.bf16.mxu0 0
        %421 = vmatpush1.bf16.msra.mxu0 %v418
        %422 = vmatprep.subr.bf16.mxu0 0
        %423 = vmatpush1.bf16.msra.mxu0 0
        %424 = vmatprep.subr.bf16.mxu0 0
        %425 = vmatpush1.bf16.msra.mxu0 0
        %426 = vmatprep.subr.bf16.mxu0 0
        %427 = vmatpush1.bf16.msra.mxu0 0
        %428 = vmatprep.subr.bf16.mxu0 0
        %429 = vmatpush1.bf16.msra.mxu0 0
        %430 = vmatprep.subr.bf16.mxu0 0
        %431 = vmatpush1.bf16.msra.mxu0 0
        %432 = vmatprep.subr.bf16.mxu0 0
        %433 = vmatpush1.bf16.msra.mxu0 0
        %434 = vmatprep.subr.bf16.mxu0 0
        %435 = vmatpush1.bf16.msra.mxu0 0
        %436 = vmatprep.subr.bf16.mxu0 0
        %437 = vmatpush1.bf16.msra.mxu0 0
        %438 = vmatprep.subr.bf16.mxu0 0
        %439 = vmatpush1.bf16.msra.mxu0 0
        %440 = vmatprep.subr.bf16.mxu0 0
        %441 = vmatpush1.bf16.msra.mxu0 0
        %442 = vmatprep.subr.bf16.mxu0 0
        %443 = vmatpush1.bf16.msra.mxu0 0
        %444 = vmatprep.subr.bf16.mxu0 0
        %445 = vmatpush1.bf16.msra.mxu0 0
        %446 = vmatprep.subr.bf16.mxu0 0
        %447 = vmatpush1.bf16.msra.mxu0 0
        %448 = vmatprep.subr.bf16.mxu0 0
        %449 = vmatpush1.bf16.msra.mxu0 0
        %450 = vmatprep.subr.bf16.mxu0 0
        %451 = vmatpush1.bf16.msra.mxu0 0
        %452 = vmatprep.mubr.bf16.mxu0 0
        %453 = vmatmul.mubr.bf16.gmra.mrb[0].mxu0 %v414
        %v454 = vpop.f32.mrb[0].mxu0
        %v455 = vadd.f32 0.0, %v454
        %v456 = vpop.f32.mrb[0].mxu0
        %v457 = vpop.f32.mrb[0].mxu0
        %v458 = vpop.f32.mrb[0].mxu0
        %459 = vdwg.mxu0
        %460 = vst.msk [vmem:[#allocation2] sm:$0xff] %vm344, %v455
        %462 = vrot.lane.b32.xlu0 %v339, 120
        %v463 = vpop.permute.xlu0 %462
        %464 = vrot.lane.b32.xlu0 %v340, 88
        %v465 = vpop.permute.xlu0 %464
        %v467 = vsel %vm344, %v463, 0
        %v470 = vsel %vm344, %v465, 0
        %472 = vmatprep.subr.bf16.mxu0 0
        %473 = vmatpush1.bf16.xpose.msra.mxu0 %v470
        %474 = vmatprep.subr.bf16.mxu0 0
        %475 = vmatpush1.bf16.xpose.msra.mxu0 0
        %476 = vmatprep.subr.bf16.mxu0 0
        %477 = vmatpush1.bf16.xpose.msra.mxu0 0
        %478 = vmatprep.subr.bf16.mxu0 0
        %479 = vmatpush1.bf16.xpose.msra.mxu0 0
        %480 = vmatprep.subr.bf16.mxu0 0
        %481 = vmatpush1.bf16.xpose.msra.mxu0 0
        %482 = vmatprep.subr.bf16.mxu0 0
        %483 = vmatpush1.bf16.xpose.msra.mxu0 0
        %484 = vmatprep.subr.bf16.mxu0 0
        %485 = vmatpush1.bf16.xpose.msra.mxu0 0
        %486 = vmatprep.subr.bf16.mxu0 0
        %487 = vmatpush1.bf16.xpose.msra.mxu0 0
        %488 = vmatprep.subr.bf16.mxu0 0
        %489 = vmatpush1.bf16.xpose.msra.mxu0 0
        %490 = vmatprep.subr.bf16.mxu0 0
        %491 = vmatpush1.bf16.xpose.msra.mxu0 0
        %492 = vmatprep.subr.bf16.mxu0 0
        %493 = vmatpush1.bf16.xpose.msra.mxu0 0
        %494 = vmatprep.subr.bf16.mxu0 0
        %495 = vmatpush1.bf16.xpose.msra.mxu0 0
        %496 = vmatprep.subr.bf16.mxu0 0
        %497 = vmatpush1.bf16.xpose.msra.mxu0 0
        %498 = vmatprep.subr.bf16.mxu0 0
        %499 = vmatpush1.bf16.xpose.msra.mxu0 0
        %500 = vmatprep.subr.bf16.mxu0 0
        %501 = vmatpush1.bf16.xpose.msra.mxu0 0
        %502 = vmatprep.subr.bf16.mxu0 0
        %503 = vmatpush1.bf16.xpose.msra.mxu0 0
        %504 = vmatprep.mubr.bf16.mxu0 0
        %505 = vmatmul.mubr.bf16.gmra.mrb[0].mxu0 %v467
        %v506 = vpop.f32.mrb[0].mxu0
        %v507 = vadd.f32 0.0, %v506
        %v508 = vpop.f32.mrb[0].mxu0
        %v509 = vpop.f32.mrb[0].mxu0
        %v510 = vpop.f32.mrb[0].mxu0
        %511 = vdwg.mxu0
        %v512 = vsel %vm344, %v507, -inf
        %v513 = vrot.slane %v512, 4
        %v514 = vmax.f32 %v512, %v513
        %v515 = vrot.slane %v514, 2
        %v516 = vmax.f32 %v514, %v515
        %v517 = vrot.slane %v516, 1
        %v518 = vmax.f32 %v516, %v517
        %v519 = vsub.f32 %v507, %v518
        %v520 = vmul.f32 %v519, 1.442695
        %v521 = vpow.pop %v520
        %v522 = vsel %vm344, %v521, 0.0
        %v523 = vrot.slane %v522, 4
        %v524 = vadd.f32 %v522, %v523
        %v525 = vrot.slane %v524, 2
        %v526 = vadd.f32 %v524, %v525
        %v527 = vrot.slane %v526, 1
        %v528 = vadd.f32 %v526, %v527
        %v529 = vrcp.pop %v528
        %v530 = vmul.f32 %v521, %v529
        %v531 = vpack.c.bf16 %v530, %v530
        %532 = vrot.lane.b32.xlu0 %v340, 56
        %v533 = vpop.permute.xlu0 %532
        %v535 = vsel %vm344, %v531, 0
        %v538 = vsel %vm416, %v533, 0
        %540 = vmatprep.subr.bf16.mxu0 0
        %541 = vmatpush1.bf16.msra.mxu0 %v538
        %542 = vmatprep.subr.bf16.mxu0 0
        %543 = vmatpush1.bf16.msra.mxu0 0
        %544 = vmatprep.subr.bf16.mxu0 0
        %545 = vmatpush1.bf16.msra.mxu0 0
        %546 = vmatprep.subr.bf16.mxu0 0
        %547 = vmatpush1.bf16.msra.mxu0 0
        %548 = vmatprep.subr.bf16.mxu0 0
        %549 = vmatpush1.bf16.msra.mxu0 0
        %550 = vmatprep.subr.bf16.mxu0 0
        %551 = vmatpush1.bf16.msra.mxu0 0
        %552 = vmatprep.subr.bf16.mxu0 0
        %553 = vmatpush1.bf16.msra.mxu0 0
        %554 = vmatprep.subr.bf16.mxu0 0
        %555 = vmatpush1.bf16.msra.mxu0 0
        %556 = vmatprep.subr.bf16.mxu0 0
        %557 = vmatpush1.bf16.msra.mxu0 0
        %558 = vmatprep.subr.bf16.mxu0 0
        %559 = vmatpush1.bf16.msra.mxu0 0
        %560 = vmatprep.subr.bf16.mxu0 0
        %561 = vmatpush1.bf16.msra.mxu0 0
        %562 = vmatprep.subr.bf16.mxu0 0
        %563 = vmatpush1.bf16.msra.mxu0 0
        %564 = vmatprep.subr.bf16.mxu0 0
        %565 = vmatpush1.bf16.msra.mxu0 0
        %566 = vmatprep.subr.bf16.mxu0 0
        %567 = vmatpush1.bf16.msra.mxu0 0
        %568 = vmatprep.subr.bf16.mxu0 0
        %569 = vmatpush1.bf16.msra.mxu0 0
        %570 = vmatprep.subr.bf16.mxu0 0
        %571 = vmatpush1.bf16.msra.mxu0 0
        %572 = vmatprep.mubr.bf16.mxu0 0
        %573 = vmatmul.mubr.bf16.gmra.mrb[0].mxu0 %v535
        %v574 = vpop.f32.mrb[0].mxu0
        %v575 = vadd.f32 0.0, %v574
        %v576 = vpop.f32.mrb[0].mxu0
        %v577 = vpop.f32.mrb[0].mxu0
        %v578 = vpop.f32.mrb[0].mxu0
        %579 = vdwg.mxu0
        %581 = vrot.lane.b32.xlu0 %v575, 8
        %v582 = vpop.permute.xlu0 %581
        %vm584 = vcmask 130112
        %585 = vst.msk [vmem:[#allocation2] sm:$0xff] %vm584, %v582
        %586 = vrot.lane.b32.xlu0 %v339, 112
        %v587 = vpop.permute.xlu0 %586
        %588 = vrot.lane.b32.xlu0 %v340, 80
        %v589 = vpop.permute.xlu0 %588
        %v591 = vsel %vm344, %v587, 0
        %v594 = vsel %vm344, %v589, 0
        %596 = vmatprep.subr.bf16.mxu0 0
        %597 = vmatpush1.bf16.xpose.msra.mxu0 %v594
        %598 = vmatprep.subr.bf16.mxu0 0
        %599 = vmatpush1.bf16.xpose.msra.mxu0 0
        %600 = vmatprep.subr.bf16.mxu0 0
        %601 = vmatpush1.bf16.xpose.msra.mxu0 0
        %602 = vmatprep.subr.bf16.mxu0 0
        %603 = vmatpush1.bf16.xpose.msra.mxu0 0
        %604 = vmatprep.subr.bf16.mxu0 0
        %605 = vmatpush1.bf16.xpose.msra.mxu0 0
        %606 = vmatprep.subr.bf16.mxu0 0
        %607 = vmatpush1.bf16.xpose.msra.mxu0 0
        %608 = vmatprep.subr.bf16.mxu0 0
        %609 = vmatpush1.bf16.xpose.msra.mxu0 0
        %610 = vmatprep.subr.bf16.mxu0 0
        %611 = vmatpush1.bf16.xpose.msra.mxu0 0
        %612 = vmatprep.subr.bf16.mxu0 0
        %613 = vmatpush1.bf16.xpose.msra.mxu0 0
        %614 = vmatprep.subr.bf16.mxu0 0
        %615 = vmatpush1.bf16.xpose.msra.mxu0 0
        %616 = vmatprep.subr.bf16.mxu0 0
        %617 = vmatpush1.bf16.xpose.msra.mxu0 0
        %618 = vmatprep.subr.bf16.mxu0 0
        %619 = vmatpush1.bf16.xpose.msra.mxu0 0
        %620 = vmatprep.subr.bf16.mxu0 0
        %621 = vmatpush1.bf16.xpose.msra.mxu0 0
        %622 = vmatprep.subr.bf16.mxu0 0
        %623 = vmatpush1.bf16.xpose.msra.mxu0 0
        %624 = vmatprep.subr.bf16.mxu0 0
        %625 = vmatpush1.bf16.xpose.msra.mxu0 0
        %626 = vmatprep.subr.bf16.mxu0 0
        %627 = vmatpush1.bf16.xpose.msra.mxu0 0
        %628 = vmatprep.mubr.bf16.mxu0 0
        %629 = vmatmul.mubr.bf16.gmra.mrb[0].mxu0 %v591
        %v630 = vpop.f32.mrb[0].mxu0
        %v631 = vadd.f32 0.0, %v630
        %v632 = vpop.f32.mrb[0].mxu0
        %v633 = vpop.f32.mrb[0].mxu0
        %v634 = vpop.f32.mrb[0].mxu0
        %635 = vdwg.mxu0
        %v636 = vsel %vm344, %v631, -inf
        %v637 = vrot.slane %v636, 4
        %v638 = vmax.f32 %v636, %v637
        %v639 = vrot.slane %v638, 2
        %v640 = vmax.f32 %v638, %v639
        %v641 = vrot.slane %v640, 1
        %v642 = vmax.f32 %v640, %v641
        %v643 = vsub.f32 %v631, %v642
        %v644 = vmul.f32 %v643, 1.442695
        %v645 = vpow.pop %v644
        %v646 = vsel %vm344, %v645, 0.0
        %v647 = vrot.slane %v646, 4
        %v648 = vadd.f32 %v646, %v647
        %v649 = vrot.slane %v648, 2
        %v650 = vadd.f32 %v648, %v649
        %v651 = vrot.slane %v650, 1
        %v652 = vadd.f32 %v650, %v651
        %v653 = vrcp.pop %v652
        %v654 = vmul.f32 %v645, %v653
        %v655 = vpack.c.bf16 %v654, %v654
        %656 = vrot.lane.b32.xlu0 %v340, 48
        %v657 = vpop.permute.xlu0 %656
        %v659 = vsel %vm344, %v655, 0
        %v662 = vsel %vm416, %v657, 0
        %664 = vmatprep.subr.bf16.mxu0 0
        %665 = vmatpush1.bf16.msra.mxu0 %v662
        %666 = vmatprep.subr.bf16.mxu0 0
        %667 = vmatpush1.bf16.msra.mxu0 0
        %668 = vmatprep.subr.bf16.mxu0 0
        %669 = vmatpush1.bf16.msra.mxu0 0
        %670 = vmatprep.subr.bf16.mxu0 0
        %671 = vmatpush1.bf16.msra.mxu0 0
        %672 = vmatprep.subr.bf16.mxu0 0
        %673 = vmatpush1.bf16.msra.mxu0 0
        %674 = vmatprep.subr.bf16.mxu0 0
        %675 = vmatpush1.bf16.msra.mxu0 0
        %676 = vmatprep.subr.bf16.mxu0 0
        %677 = vmatpush1.bf16.msra.mxu0 0
        %678 = vmatprep.subr.bf16.mxu0 0
        %679 = vmatpush1.bf16.msra.mxu0 0
        %680 = vmatprep.subr.bf16.mxu0 0
        %681 = vmatpush1.bf16.msra.mxu0 0
        %682 = vmatprep.subr.bf16.mxu0 0
        %683 = vmatpush1.bf16.msra.mxu0 0
        %684 = vmatprep.subr.bf16.mxu0 0
        %685 = vmatpush1.bf16.msra.mxu0 0
        %686 = vmatprep.subr.bf16.mxu0 0
        %687 = vmatpush1.bf16.msra.mxu0 0
        %688 = vmatprep.subr.bf16.mxu0 0
        %689 = vmatpush1.bf16.msra.mxu0 0
        %690 = vmatprep.subr.bf16.mxu0 0
        %691 = vmatpush1.bf16.msra.mxu0 0
        %692 = vmatprep.subr.bf16.mxu0 0
        %693 = vmatpush1.bf16.msra.mxu0 0
        %694 = vmatprep.subr.bf16.mxu0 0
        %695 = vmatpush1.bf16.msra.mxu0 0
        %696 = vmatprep.mubr.bf16.mxu0 0
        %697 = vmatmul.mubr.bf16.gmra.mrb[0].mxu0 %v659
        %v698 = vpop.f32.mrb[0].mxu0
        %v699 = vadd.f32 0.0, %v698
        %v700 = vpop.f32.mrb[0].mxu0
        %v701 = vpop.f32.mrb[0].mxu0
        %v702 = vpop.f32.mrb[0].mxu0
        %703 = vdwg.mxu0
        %705 = vrot.lane.b32.xlu0 %v699, 16
        %v706 = vpop.permute.xlu0 %705
        %vm708 = vcmask 195712
        %709 = vst.msk [vmem:[#allocation2] sm:$0xff] %vm708, %v706
        %710 = vrot.lane.b32.xlu0 %v339, 104
        %v711 = vpop.permute.xlu0 %710
        %712 = vrot.lane.b32.xlu0 %v340, 72
        %v713 = vpop.permute.xlu0 %712
        %v715 = vsel %vm344, %v711, 0
        %v718 = vsel %vm344, %v713, 0
        %720 = vmatprep.subr.bf16.mxu0 0
        %721 = vmatpush1.bf16.xpose.msra.mxu0 %v718
        %722 = vmatprep.subr.bf16.mxu0 0
        %723 = vmatpush1.bf16.xpose.msra.mxu0 0
        %724 = vmatprep.subr.bf16.mxu0 0
        %725 = vmatpush1.bf16.xpose.msra.mxu0 0
        %726 = vmatprep.subr.bf16.mxu0 0
        %727 = vmatpush1.bf16.xpose.msra.mxu0 0
        %728 = vmatprep.subr.bf16.mxu0 0
        %729 = vmatpush1.bf16.xpose.msra.mxu0 0
        %730 = vmatprep.subr.bf16.mxu0 0
        %731 = vmatpush1.bf16.xpose.msra.mxu0 0
        %732 = vmatprep.subr.bf16.mxu0 0
        %733 = vmatpush1.bf16.xpose.msra.mxu0 0
        %734 = vmatprep.subr.bf16.mxu0 0
        %735 = vmatpush1.bf16.xpose.msra.mxu0 0
        %736 = vmatprep.subr.bf16.mxu0 0
        %737 = vmatpush1.bf16.xpose.msra.mxu0 0
        %738 = vmatprep.subr.bf16.mxu0 0
        %739 = vmatpush1.bf16.xpose.msra.mxu0 0
        %740 = vmatprep.subr.bf16.mxu0 0
        %741 = vmatpush1.bf16.xpose.msra.mxu0 0
        %742 = vmatprep.subr.bf16.mxu0 0
        %743 = vmatpush1.bf16.xpose.msra.mxu0 0
        %744 = vmatprep.subr.bf16.mxu0 0
        %745 = vmatpush1.bf16.xpose.msra.mxu0 0
        %746 = vmatprep.subr.bf16.mxu0 0
        %747 = vmatpush1.bf16.xpose.msra.mxu0 0
        %748 = vmatprep.subr.bf16.mxu0 0
        %749 = vmatpush1.bf16.xpose.msra.mxu0 0
        %750 = vmatprep.subr.bf16.mxu0 0
        %751 = vmatpush1.bf16.xpose.msra.mxu0 0
        %752 = vmatprep.mubr.bf16.mxu0 0
        %753 = vmatmul.mubr.bf16.gmra.mrb[0].mxu0 %v715
        %v754 = vpop.f32.mrb[0].mxu0
        %v755 = vadd.f32 0.0, %v754
        %v756 = vpop.f32.mrb[0].mxu0
        %v757 = vpop.f32.mrb[0].mxu0
        %v758 = vpop.f32.mrb[0].mxu0
        %759 = vdwg.mxu0
        %v760 = vsel %vm344, %v755, -inf
        %v761 = vrot.slane %v760, 4
        %v762 = vmax.f32 %v760, %v761
        %v763 = vrot.slane %v762, 2
        %v764 = vmax.f32 %v762, %v763
        %v765 = vrot.slane %v764, 1
        %v766 = vmax.f32 %v764, %v765
        %v767 = vsub.f32 %v755, %v766
        %v768 = vmul.f32 %v767, 1.442695
        %v769 = vpow.pop %v768
        %v770 = vsel %vm344, %v769, 0.0
        %v771 = vrot.slane %v770, 4
        %v772 = vadd.f32 %v770, %v771
        %v773 = vrot.slane %v772, 2
        %v774 = vadd.f32 %v772, %v773
        %v775 = vrot.slane %v774, 1
        %v776 = vadd.f32 %v774, %v775
        %v777 = vrcp.pop %v776
        %v778 = vmul.f32 %v769, %v777
        %v779 = vpack.c.bf16 %v778, %v778
        %780 = vrot.lane.b32.xlu0 %v340, 40
        %v781 = vpop.permute.xlu0 %780
        %v783 = vsel %vm344, %v779, 0
        %v786 = vsel %vm416, %v781, 0
        %788 = vmatprep.subr.bf16.mxu0 0
        %789 = vmatpush1.bf16.msra.mxu0 %v786
        %790 = vmatprep.subr.bf16.mxu0 0
        %791 = vmatpush1.bf16.msra.mxu0 0
        %792 = vmatprep.subr.bf16.mxu0 0
        %793 = vmatpush1.bf16.msra.mxu0 0
        %794 = vmatprep.subr.bf16.mxu0 0
        %795 = vmatpush1.bf16.msra.mxu0 0
        %796 = vmatprep.subr.bf16.mxu0 0
        %797 = vmatpush1.bf16.msra.mxu0 0
        %798 = vmatprep.subr.bf16.mxu0 0
        %799 = vmatpush1.bf16.msra.mxu0 0
        %800 = vmatprep.subr.bf16.mxu0 0
        %801 = vmatpush1.bf16.msra.mxu0 0
        %802 = vmatprep.subr.bf16.mxu0 0
        %803 = vmatpush1.bf16.msra.mxu0 0
        %804 = vmatprep.subr.bf16.mxu0 0
        %805 = vmatpush1.bf16.msra.mxu0 0
        %806 = vmatprep.subr.bf16.mxu0 0
        %807 = vmatpush1.bf16.msra.mxu0 0
        %808 = vmatprep.subr.bf16.mxu0 0
        %809 = vmatpush1.bf16.msra.mxu0 0
        %810 = vmatprep.subr.bf16.mxu0 0
        %811 = vmatpush1.bf16.msra.mxu0 0
        %812 = vmatprep.subr.bf16.mxu0 0
        %813 = vmatpush1.bf16.msra.mxu0 0
        %814 = vmatprep.subr.bf16.mxu0 0
        %815 = vmatpush1.bf16.msra.mxu0 0
        %816 = vmatprep.subr.bf16.mxu0 0
        %817 = vmatpush1.bf16.msra.mxu0 0
        %818 = vmatprep.subr.bf16.mxu0 0
        %819 = vmatpush1.bf16.msra.mxu0 0
        %820 = vmatprep.mubr.bf16.mxu0 0
        %821 = vmatmul.mubr.bf16.gmra.mrb[0].mxu0 %v783
        %v822 = vpop.f32.mrb[0].mxu0
        %v823 = vadd.f32 0.0, %v822
        %v824 = vpop.f32.mrb[0].mxu0
        %v825 = vpop.f32.mrb[0].mxu0
        %v826 = vpop.f32.mrb[0].mxu0
        %827 = vdwg.mxu0
        %829 = vrot.lane.b32.xlu0 %v823, 24
        %v830 = vpop.permute.xlu0 %829
        %vm832 = vcmask 261312
        %833 = vst.msk [vmem:[#allocation2] sm:$0xff] %vm832, %v830
        %v834 = vld [vmem:[#allocation2] sm:$0xff]
        %v835 = vpack.c.bf16 %v834, %v834
        %v836 = vld [vmem:[#allocation8] sm:$0xf]
        %v837 = vld [vmem:[#allocation8 + $0x4] sm:$0xf]
        %v838 = vld [vmem:[#allocation8 + $0x8] sm:$0xf]
        %v839 = vld [vmem:[#allocation8 + $0xc] sm:$0xf]
        %v840 = vld [vmem:[%s4] sm:$0x1]
        %v842 = vlaneseq
        %v843 = vshrl.u32 %v842, 7
        %v844 = vsub.s32 0, %v843
        %v845 = vrot.slane %v840, %v844
        %v851 = vunpack.c.l.b16 %v836
        %v852 = vunpack.c.l.b16 %v837
        %v853 = vunpack.c.l.b16 %v838
        %v854 = vunpack.c.l.b16 %v839
        %v855 = vpack.c.b16 %v852, %v851
        %v856 = vpack.c.b16 %v854, %v853
        %v860 = vsel %vm294, %v835, 0
        %862 = vmatprep.subr.bf16.mxu0 0
        %863 = vmatpush1.bf16.msra.mxu0 %v855
        %864 = vmatprep.subr.bf16.mxu0 0
        %865 = vmatpush1.bf16.msra.mxu0 %v856
        %866 = vmatprep.subr.bf16.mxu0 0
        %867 = vmatpush1.bf16.msra.mxu0 0
        %868 = vmatprep.subr.bf16.mxu0 0
        %869 = vmatpush1.bf16.msra.mxu0 0
        %870 = vmatprep.subr.bf16.mxu0 0
        %871 = vmatpush1.bf16.msra.mxu0 0
        %872 = vmatprep.subr.bf16.mxu0 0
        %873 = vmatpush1.bf16.msra.mxu0 0
        %874 = vmatprep.subr.bf16.mxu0 0
        %875 = vmatpush1.bf16.msra.mxu0 0
        %876 = vmatprep.subr.bf16.mxu0 0
        %877 = vmatpush1.bf16.msra.mxu0 0
        %878 = vmatprep.subr.bf16.mxu0 0
        %879 = vmatpush1.bf16.msra.mxu0 0
        %880 = vmatprep.subr.bf16.mxu0 0
        %881 = vmatpush1.bf16.msra.mxu0 0
        %882 = vmatprep.subr.bf16.mxu0 0
        %883 = vmatpush1.bf16.msra.mxu0 0
        %884 = vmatprep.subr.bf16.mxu0 0
        %885 = vmatpush1.bf16.msra.mxu0 0
        %886 = vmatprep.subr.bf16.mxu0 0
        %887 = vmatpush1.bf16.msra.mxu0 0
        %888 = vmatprep.subr.bf16.mxu0 0
        %889 = vmatpush1.bf16.msra.mxu0 0
        %890 = vmatprep.subr.bf16.mxu0 0
        %891 = vmatpush1.bf16.msra.mxu0 0
        %892 = vmatprep.subr.bf16.mxu0 0
        %893 = vmatpush1.bf16.msra.mxu0 0
        %894 = vmatprep.mubr.bf16.mxu0 0
        %895 = vmatmul.mubr.bf16.gmra.mrb[0].mxu0 %v860
        %v896 = vpop.f32.mrb[0].mxu0
        %v897 = vadd.f32 %v845, %v896
        %v898 = vpop.f32.mrb[0].mxu0
        %v899 = vpop.f32.mrb[0].mxu0
        %v900 = vpop.f32.mrb[0].mxu0
        %901 = vdwg.mxu0
        %902 = vst.msk [vmem:[%s268] sm:$0xff] %vm294, %v897
        %s903 = sand.u32 %s141, 1
        %s904 = scalar_lea.sflag [#allocation5], %s903
        %s905 = sand.u32 %s141, 1
        %s906 = smul.addr %s905, 8
        %s907 = scalar_lea.vmem [#allocation9], %s906
        // Predicated region
        $region53: #{tpu_custom_call.1} parent=39 // pred_check
          %p908 = pneg %p151
        $region54: #{tpu_custom_call.1} parent=39 // pred_check_branch
          %910 = sbr.rel (%p908) target = $region56
        $region55: #{tpu_custom_call.1} parent=39 // pred_region
          %s912 = ssub.s32 128, 128
          %913 = vsyncadd %s904, %s912
          %s914 = smul.addr %s23, 128
          %s915 = scalar_lea.hbm %s5, %s914
          %s917 = sshll.u32 %s907, 4
          %s918 = int_to_ptr.vmem [resolvable:$true] %s917
          %920 = dma.vmem_to_hbm [thread:$0]  %s918, 128, %s915, %s904
        $region56: #{tpu_custom_call.1} parent=39 // pred_fallthru
          _
      $region40: #{tpu_custom_call.1} parent=5 // pred_fallthru
        _
      %p921 = scmp.le.s32.totalorder 2, %s18
      // Predicated region
      $region57: #{tpu_custom_call.1} parent=5 // pred_check
        %p922 = pneg %p921
      $region58: #{tpu_custom_call.1} parent=5 // pred_check_branch
        %924 = sbr.rel (%p922) target = $region60
      $region59: #{tpu_custom_call.1} parent=5 // pred_region
        %s925 = ssub.s32 %s18, 2
        // Predicated region
        $region61: #{tpu_custom_call.1} parent=59 // pred_check
          %p926 = pneg %p157
        $region62: #{tpu_custom_call.1} parent=59 // pred_check_branch
          %928 = sbr.rel (%p926) target = $region64
        $region63: #{tpu_custom_call.1} parent=59 // pred_region
          %s929 = sand.u32 %s142, 1
          %s930 = scalar_lea.sflag [#allocation5], %s929
          %s931 = sand.u32 %s142, 1
          %s932 = smul.addr %s931, 8
          %s933 = scalar_lea.vmem [#allocation9], %s932
          %934 = dma.done %s930, 128
        $region64: #{tpu_custom_call.1} parent=59 // pred_fallthru
          _
      $region60: #{tpu_custom_call.1} parent=5 // pred_fallthru
        _
    $region6: #{tpu_custom_call.1} parent=1 // loop_footer
      %s22 = sadd.s32 1, %s18
    $region7: #{tpu_custom_call.1} parent=1 // loop_footer_branch
      %17 = sbr.rel target = $region3
    $region8: #{tpu_custom_call.1} parent=1 // loop_exit
      _
    %935 = vsyncpa [#allocation4], 1
    %s936 = scalar_lea.sflag [#allocation4], 1
    %937 = vsyncpa %s936, 1
    %938 = vsyncpa [#allocation7], 1
    %939 = vsyncpa [#allocation5], 1
    %s940 = scalar_lea.sflag [#allocation5], 1
    %941 = vsyncpa %s940, 1

</llo_original>
